<compile_context>
chip_gen: v5e
topology: v5e:2x2
jax: 0.10.0
libtpu: 0.0.40
codegen_flags: <defaults>
</compile_context>

<pallas_src>
import jax
import jax.numpy as jnp
from jax.experimental import pallas as pl
from jax.experimental.pallas import tpu as pltpu


def _mlp_kernel(x_ref, w1_ref, b1_ref, w2_ref, b2_ref, o_ref):
    # Hidden layer: (TB, F) @ (F, H) + (1, H), then ReLU (all f32).
    h = jnp.dot(x_ref[...], w1_ref[...], preferred_element_type=jnp.float32)
    h = jnp.maximum(h + b1_ref[...], 0.0)
    # Output layer: (TB, H) @ (H, O) + (1, O).
    o = jnp.dot(h, w2_ref[...], preferred_element_type=jnp.float32)
    o_ref[...] = (o + b2_ref[...]).astype(o_ref.dtype)


def first_net_forward(x, w1, b1, w2, b2, *, batch_tile=512):
    """x: (B, F); w1: (F, H); b1: (H,); w2: (H, O); b2: (O,) -> (B, O)."""
    B, F = x.shape
    H = w1.shape[1]
    O = w2.shape[1]
    b1_2d = b1.reshape(1, H)
    b2_2d = b2.reshape(1, O)

    if B <= batch_tile:
        # Tiny / moderate batch: single invocation, no grid, no pipelining.
        # All operands are whole-array VMEM refs (well under any VMEM limit
        # at these feature sizes on v5e/v6e/v7x).
        return pl.pallas_call(
            _mlp_kernel,
            out_shape=jax.ShapeDtypeStruct((B, O), x.dtype),
            in_specs=[pl.BlockSpec(memory_space=pltpu.MemorySpace.VMEM)] * 5,
            out_specs=pl.BlockSpec(memory_space=pltpu.MemorySpace.VMEM),
        )(x, w1, b1_2d, w2, b2_2d)

    # Large batch: tile only the batch dimension. Weights / biases use a
    # constant index_map so they stay VMEM-resident across grid steps; x and
    # the output stream through in (TB, .) tiles, amortizing per-step
    # overhead. The batch axis is "parallel" so v7x's two TensorCores can
    # split it.
    TB = batch_tile
    n_tiles = -(-B // TB)          # ceil-div with static Python ints
    B_pad = n_tiles * TB
    if B_pad != B:
        x = jnp.pad(x, ((0, B_pad - B), (0, 0)))

    # TODO(synk): for very large B, pad O up to 128 in the wrapper for a
    # lane-dense (unmasked) store path; unnecessary at these sizes.
    out = pl.pallas_call(
        _mlp_kernel,
        out_shape=jax.ShapeDtypeStruct((B_pad, O), x.dtype),
        grid=(n_tiles,),
        in_specs=[
            pl.BlockSpec((TB, F), lambda i: (i, 0)),
            pl.BlockSpec((F, H), lambda i: (0, 0)),
            pl.BlockSpec((1, H), lambda i: (0, 0)),
            pl.BlockSpec((H, O), lambda i: (0, 0)),
            pl.BlockSpec((1, O), lambda i: (0, 0)),
        ],
        out_specs=pl.BlockSpec((TB, O), lambda i: (i, 0)),
        compiler_params=pltpu.CompilerParams(
            dimension_semantics=("parallel",)),
    )(x, w1, b1_2d, w2, b2_2d)
    return out[:B]


if __name__ == "__main__":
    # Small shapes consistent with the module's forward:
    #   n_feature=32, n_hidden=64, n_output=16, batch=8
    B, n_feature, n_hidden, n_output = 8, 32, 64, 16

    key = jax.random.PRNGKey(0)
    kx, kw1, kb1, kw2, kb2 = jax.random.split(key, 5)

    x = jax.random.normal(kx, (B, n_feature), dtype=jnp.float32)

    # Deterministic parameter init (PyTorch Linear weight is (out, in);
    # here we store the transposed (in, out) layout for the kernel).
    w1 = jax.random.normal(kw1, (n_feature, n_hidden), dtype=jnp.float32) * 0.1
    b1 = jax.random.normal(kb1, (n_hidden,), dtype=jnp.float32) * 0.1
    w2 = jax.random.normal(kw2, (n_hidden, n_output), dtype=jnp.float32) * 0.1
    b2 = jax.random.normal(kb2, (n_output,), dtype=jnp.float32) * 0.1

    def ref_fwd(xx):
        return jnp.maximum(xx @ w1 + b1, 0.0) @ w2 + b2

    # --- Path 1: tiny batch, un-gridded single-block kernel. ---
    out = jax.block_until_ready(first_net_forward(x, w1, b1, w2, b2))
    assert out.shape == (B, n_output)
    assert jnp.allclose(out, ref_fwd(x), atol=1e-5, rtol=1e-5)

    # --- Path 2: batch-tiled kernel (weights VMEM-resident, parallel axis). ---
    B_big = 1024
    x_big = jax.random.normal(
        jax.random.PRNGKey(1), (B_big, n_feature), dtype=jnp.float32)
    out_big = jax.block_until_ready(
        first_net_forward(x_big, w1, b1, w2, b2, batch_tile=512))
    assert out_big.shape == (B_big, n_output)
    assert jnp.allclose(out_big, ref_fwd(x_big), atol=1e-5, rtol=1e-5)

    print("KERNEL_OK")
</pallas_src>

<mosaic_0001>
module attributes {stable_mosaic.version = 11 : i64} {
  func.func @_mlp_kernel(%arg0: memref<8x32xf32, #tpu.memory_space<vmem>>, %arg1: memref<32x64xf32, #tpu.memory_space<vmem>>, %arg2: memref<1x64xf32, #tpu.memory_space<vmem>>, %arg3: memref<64x16xf32, #tpu.memory_space<vmem>>, %arg4: memref<1x16xf32, #tpu.memory_space<vmem>>, %arg5: memref<8x16xf32, #tpu.memory_space<vmem>>) attributes {dimension_semantics = [], scalar_prefetch = 0 : i64, scratch_operands = 0 : i64, tpu.core_type = #tpu.core_type<tc>} {
    %c0 = arith.constant 0 : index
    %c0_0 = arith.constant 0 : index
    %0 = vector.load %arg0[%c0, %c0_0] : memref<8x32xf32, #tpu.memory_space<vmem>>, vector<8x32xf32>
    %c0_1 = arith.constant 0 : index
    %c0_2 = arith.constant 0 : index
    %1 = vector.load %arg1[%c0_1, %c0_2] : memref<32x64xf32, #tpu.memory_space<vmem>>, vector<32x64xf32>
    %cst = arith.constant dense<0.000000e+00> : vector<8x64xf32>
    %2 = tpu.matmul %0, %1, %cst {dimension_numbers = #tpu.dot_dimension_numbers<[1], [0], [0], [1], [0, 0, 1, 1], [], []>} : vector<8x32xf32>, vector<32x64xf32>, vector<8x64xf32> -> vector<8x64xf32>
    %c0_3 = arith.constant 0 : index
    %c0_4 = arith.constant 0 : index
    %3 = vector.load %arg2[%c0_3, %c0_4] : memref<1x64xf32, #tpu.memory_space<vmem>>, vector<1x64xf32>
    %4 = vector.broadcast %3 : vector<1x64xf32> to vector<8x64xf32>
    %5 = arith.addf %2, %4 : vector<8x64xf32>
    %cst_5 = arith.constant 0.000000e+00 : f32
    %6 = vector.broadcast %cst_5 : f32 to vector<8x64xf32>
    %7 = arith.maximumf %5, %6 : vector<8x64xf32>
    %c0_6 = arith.constant 0 : index
    %c0_7 = arith.constant 0 : index
    %8 = vector.load %arg3[%c0_6, %c0_7] : memref<64x16xf32, #tpu.memory_space<vmem>>, vector<64x16xf32>
    %cst_8 = arith.constant dense<0.000000e+00> : vector<8x16xf32>
    %9 = tpu.matmul %7, %8, %cst_8 {dimension_numbers = #tpu.dot_dimension_numbers<[1], [0], [0], [1], [0, 0, 1, 1], [], []>} : vector<8x64xf32>, vector<64x16xf32>, vector<8x16xf32> -> vector<8x16xf32>
    %c0_9 = arith.constant 0 : index
    %c0_10 = arith.constant 0 : index
    %10 = vector.load %arg4[%c0_9, %c0_10] : memref<1x16xf32, #tpu.memory_space<vmem>>, vector<1x16xf32>
    %11 = vector.broadcast %10 : vector<1x16xf32> to vector<8x16xf32>
    %12 = arith.addf %9, %11 : vector<8x16xf32>
    %c0_11 = arith.constant 0 : index
    %c0_12 = arith.constant 0 : index
    %13 = vector.load %arg5[%c0_11, %c0_12] : memref<8x16xf32, #tpu.memory_space<vmem>>, vector<8x16xf32>
    tpu.vector_store %arg5[%c0_11, %c0_12], %12 {strides = array<i32>} : memref<8x16xf32, #tpu.memory_space<vmem>>, vector<8x16xf32>,
    return
  }
}

</mosaic_0001>

<llo_original>
// kernel: tpu_custom_call.1
$region0: #{tpu_custom_call.1}
  #allocation0 [shape = 'u32[]', space=smem, size = 0x4, offset = 0x4, fixed_abs, tag = 'smem constant byte address 0x4 - core index']
  #allocation1 [shape = 'u32[72,128]{1,0:T(1,128)}', space=vmem, size = 0x9000, scoped, tag = 'internal scratch']
  %s0 = inlined_call_operand.vmem [shape: f32[8,32], index: 0, kind: input, shape index: {}]
  %s1 = inlined_call_operand.vmem [shape: f32[32,64], index: 1, kind: input, shape index: {}]
  %s2 = inlined_call_operand.vmem [shape: f32[1,64], index: 2, kind: input, shape index: {}]
  %s3 = inlined_call_operand.vmem [shape: f32[64,16], index: 3, kind: input, shape index: {}]
  %s4 = inlined_call_operand.vmem [shape: f32[1,16], index: 4, kind: input, shape index: {}]
  %s5 = inlined_call_operand.hbm [shape: f32[8,16], index: 5, kind: output, shape index: {}]
  %s6 = sld [smem:[#allocation0]]
  $region30: #{tpu_custom_call.1} parent=0
    _
  %s8 = ssub.s32 1, %s6
  %s9 = scalar_select 0, %s8, %s6
  $region1: #{tpu_custom_call.1} parent=0
    #allocation2 [shape = 'u8[4096]{0}', space=vmem, size = 0x1000, scoped, tag = 'output window, operand 0, single buffered']
    #allocation3 [shape = 's32[1]{0}', space=sflag, size = 0x4, scoped, tag = 'scoped memory for tpu_custom_call.1']
    %10 = vsyncpa [#allocation3], 0
    // Predicated region
    $region2: #{tpu_custom_call.1} parent=1 // pred_check
      _
    $region3: #{tpu_custom_call.1} parent=1 // pred_check_branch
      %12 = sbr.rel (0) target = $region5
    $region4: #{tpu_custom_call.1} parent=1 // pred_region
      _
    $region5: #{tpu_custom_call.1} parent=1 // pred_fallthru
      _
    // Predicated region
    $region6: #{tpu_custom_call.1} parent=1 // pred_check
      _
    $region7: #{tpu_custom_call.1} parent=1 // pred_check_branch
      %14 = sbr.rel (0) target = $region9
    $region8: #{tpu_custom_call.1} parent=1 // pred_region
      _
    $region9: #{tpu_custom_call.1} parent=1 // pred_fallthru
      _
    // Predicated region
    $region10: #{tpu_custom_call.1} parent=1 // pred_check
      _
    $region11: #{tpu_custom_call.1} parent=1 // pred_check_branch
      %16 = sbr.rel (0) target = $region13
    $region12: #{tpu_custom_call.1} parent=1 // pred_region
      _
    $region13: #{tpu_custom_call.1} parent=1 // pred_fallthru
      _
    // Predicated region
    $region14: #{tpu_custom_call.1} parent=1 // pred_check
      _
    $region15: #{tpu_custom_call.1} parent=1 // pred_check_branch
      %18 = sbr.rel (0) target = $region17
    $region16: #{tpu_custom_call.1} parent=1 // pred_region
      _
    $region17: #{tpu_custom_call.1} parent=1 // pred_fallthru
      _
    // Predicated region
    $region18: #{tpu_custom_call.1} parent=1 // pred_check
      _
    $region19: #{tpu_custom_call.1} parent=1 // pred_check_branch
      %20 = sbr.rel (0) target = $region21
    $region20: #{tpu_custom_call.1} parent=1 // pred_region
      _
    $region21: #{tpu_custom_call.1} parent=1 // pred_fallthru
      _
    %v21 = vld [vmem:[%s0] sm:$0xff]
    %v22 = vld [vmem:[%s1] sm:$0xff]
    %v23 = vld [vmem:[%s1 + $0x8] sm:$0xff]
    %v24 = vld [vmem:[%s1 + $0x10] sm:$0xff]
    %v25 = vld [vmem:[%s1 + $0x18] sm:$0xff]
    %v26 = vld [vmem:[%s2] sm:$0x1]
    %v28 = vperm.slane %v26, 0
    %vm30 = vcmask 261120
    %v32 = vsel %vm30, %v21, 0
    %34 = vmatpush.msra.mxu0 0.0
    %35 = vmatpush.msra.mxu0 0.0
    %36 = vmatpush.msra.mxu0 0.0
    %37 = vmatpush.msra.mxu0 0.0
    %38 = vmatpush.msra.mxu0 0.0
    %39 = vmatpush.msra.mxu0 0.0
    %40 = vmatpush.msra.mxu0 0.0
    %41 = vmatpush.msra.mxu0 0.0
    %42 = vmatpush.msra.mxu0 0.0
    %43 = vmatpush.msra.mxu0 0.0
    %44 = vmatpush.msra.mxu0 0.0
    %45 = vmatpush.msra.mxu0 0.0
    %46 = vmatpush.msra.mxu0 %v25
    %47 = vmatpush.msra.mxu0 %v24
    %48 = vmatpush.msra.mxu0 %v23
    %49 = vmatpush.msra.mxu0 %v22
    %50 = vmatmul.f32.gmra.mxu0 %v32
    %v51 = vpop.f32.mrf.mxu0
    %v52 = vadd.f32 %v28, %v51
    %53 = vdwg.mxu0
    %v54 = vmax.f32 %v52, 0.0
    %v55 = vld [vmem:[%s3] sm:$0xff]
    %v56 = vld [vmem:[%s3 + $0x8] sm:$0xff]
    %v57 = vld [vmem:[%s3 + $0x10] sm:$0xff]
    %v58 = vld [vmem:[%s3 + $0x18] sm:$0xff]
    %v59 = vld [vmem:[%s3 + $0x20] sm:$0xff]
    %v60 = vld [vmem:[%s3 + $0x28] sm:$0xff]
    %v61 = vld [vmem:[%s3 + $0x30] sm:$0xff]
    %v62 = vld [vmem:[%s3 + $0x38] sm:$0xff]
    %v63 = vld [vmem:[%s4] sm:$0x1]
    %v65 = vperm.slane %v63, 0
    %vm67 = vcmask 523264
    %v69 = vsel %vm67, %v54, 0
    %71 = vmatpush.msra.mxu0 0.0
    %72 = vmatpush.msra.mxu0 0.0
    %73 = vmatpush.msra.mxu0 0.0
    %74 = vmatpush.msra.mxu0 0.0
    %75 = vmatpush.msra.mxu0 0.0
    %76 = vmatpush.msra.mxu0 0.0
    %77 = vmatpush.msra.mxu0 0.0
    %78 = vmatpush.msra.mxu0 0.0
    %79 = vmatpush.msra.mxu0 %v62
    %80 = vmatpush.msra.mxu0 %v61
    %81 = vmatpush.msra.mxu0 %v60
    %82 = vmatpush.msra.mxu0 %v59
    %83 = vmatpush.msra.mxu0 %v58
    %84 = vmatpush.msra.mxu0 %v57
    %85 = vmatpush.msra.mxu0 %v56
    %86 = vmatpush.msra.mxu0 %v55
    %87 = vmatmul.f32.gmra.mxu0 %v69
    %v88 = vpop.f32.mrf.mxu0
    %v89 = vadd.f32 %v65, %v88
    %90 = vdwg.mxu0
    %vm91 = vcmask 130048
    %92 = vst.msk [vmem:[#allocation2] sm:$0xff] %vm91, %v89
    // Predicated region
    $region22: #{tpu_custom_call.1} parent=1 // pred_check
      _
    $region23: #{tpu_custom_call.1} parent=1 // pred_check_branch
      %94 = sbr.rel (0) target = $region25
    $region24: #{tpu_custom_call.1} parent=1 // pred_region
      %96 = vsyncadd [#allocation3], 0
      %s98 = sshll.u32 [#allocation2], 4
      %s99 = int_to_ptr.vmem [resolvable:$true] %s98
      %s100 = sshll.u32 %s5, 4
      %s101 = int_to_ptr.hbm [resolvable:$true] %s100
      %103 = dma.vmem_to_hbm [thread:$0]  %s99, 128, %s101, [#allocation3]
    $region25: #{tpu_custom_call.1} parent=1 // pred_fallthru
      _
    // Predicated region
    $region26: #{tpu_custom_call.1} parent=1 // pred_check
      _
    $region27: #{tpu_custom_call.1} parent=1 // pred_check_branch
      %105 = sbr.rel (0) target = $region29
    $region28: #{tpu_custom_call.1} parent=1 // pred_region
      %107 = dma.done [#allocation3], 128
    $region29: #{tpu_custom_call.1} parent=1 // pred_fallthru
      _
    %108 = vsyncpa [#allocation3], 1

</llo_original>
